<compile_context>
chip_gen: v7x
topology: tpu7x:2x2x1
jax: 0.10.0
libtpu: 0.0.40
codegen_flags: <defaults>
</compile_context>

<pallas_src>
import functools

import jax
import jax.numpy as jnp
from jax import lax
from jax.experimental import pallas as pl
from jax.experimental.pallas import tpu as pltpu

EPS = 1e-5


def basic_block_kernel(x_ref, b1_ref, b2_ref, avg_ref,
                       g1_ref, be1_ref, g2_ref, be2_ref,
                       out_ref, *, H, W):
    # x_ref      : (M, W*Cin)  f32, lane-dense input (row = n*H + h, lane = w*C + c)
    # b{1,2}_ref : (3, W*Cin, W*Cout)  block-banded conv weights, one per row-tap
    # avg_ref    : (W*Cout, W*Cout)    sums/broadcasts a channel over its W lane replicas
    # g*/be*_ref : (1, W*Cout)         gamma / beta pre-tiled to lane layout
    # out_ref    : (M, W*Cout)  f32, lane-dense output
    M, WCin = x_ref.shape
    mdt = b1_ref.dtype                       # matmul dtype (f32 or bf16)
    inv_count = 1.0 / (M * W)                # 1 / (N*H*W) elements per channel

    # row index of each output row inside its image (row = n*H + h)
    row_in_img = lax.broadcasted_iota(jnp.int32, (M, WCin), 0) % H

    def shift_rows(h, dy):
        """s[r] = h[r + dy] if row r+dy lies in the same image, else 0."""
        if dy == 0:
            return h
        zero = jnp.zeros((abs(dy), h.shape[1]), h.dtype)
        if dy > 0:
            s = jnp.concatenate([h[dy:, :], zero], axis=0)
            valid = row_in_img < (H - dy)
        else:
            s = jnp.concatenate([zero, h[:dy, :]], axis=0)
            valid = row_in_img >= (-dy)
        return jnp.where(valid, s, jnp.zeros_like(s))

    def conv3x3(h_m, w_ref):
        # 3 full-width MXU matmuls: one per vertical tap, horizontal taps are
        # folded into the block-banded weight matrix w_ref[t].
        acc = jnp.zeros((M, w_ref.shape[-1]), jnp.float32)
        for t in range(3):                               # t = kh; row offset t - 1
            acc = acc + jnp.dot(shift_rows(h_m, t - 1), w_ref[t],
                                preferred_element_type=jnp.float32)
        return acc

    def batchnorm(acc, gamma_lane, beta_lane):
        # Fused stats: per-lane sum / sum-of-squares, then one tiny matmul
        # against the channel-averaging matrix to reduce over the W lane
        # replicas and broadcast per-channel values back to lane layout.
        s1 = jnp.sum(acc, axis=0, keepdims=True)              # (1, W*C)
        s2 = jnp.sum(acc * acc, axis=0, keepdims=True)        # (1, W*C)
        stats = jnp.dot(jnp.concatenate([s1, s2], axis=0), avg_ref[...],
                        preferred_element_type=jnp.float32) * inv_count
        mu = stats[0:1, :]
        var = stats[1:2, :] - mu * mu                          # biased variance
        scale = gamma_lane * lax.rsqrt(var + EPS)
        shift = beta_lane - mu * scale
        return acc * scale + shift

    x_f32 = x_ref[...]                       # residual path stays in f32
    x_m = x_f32.astype(mdt)

    h1 = jnp.maximum(batchnorm(conv3x3(x_m, b1_ref), g1_ref[...], be1_ref[...]), 0.0)
    h2 = batchnorm(conv3x3(h1.astype(mdt), b2_ref), g2_ref[...], be2_ref[...])

    # identity shortcut + final relu, written lane-dense (full-lane stores)
    out_ref[...] = jnp.maximum(h2 + x_f32, 0.0)


def basic_block_nhwc(x_nhwc, w1, g1, b1, w2, g2, b2, *, matmul_dtype=jnp.float32):
    """x_nhwc: (N,H,W,C) f32; w1,w2: (3,3,Cin,Cout) HWIO; g*,b*: (Cout,)."""
    N, H, W, Cin = x_nhwc.shape
    Cout = w1.shape[-1]
    assert Cin == Cout, "identity shortcut requires in_planes == planes"
    assert w1.shape[:2] == (3, 3) and w2.shape[:2] == (3, 3)
    M, WCin, WCout = N * H, W * Cin, W * Cout

    # lane-dense activation layout: row = n*H + h, lane = w*C + c
    x2d = x_nhwc.astype(jnp.float32).reshape(M, WCin)

    def banded(wt):
        """(3,3,ci,co) HWIO -> (3, W*ci, W*co) block-banded per-row-tap weights."""
        mats = []
        for kh in range(3):
            acc = jnp.zeros((W * wt.shape[2], W * wt.shape[3]), jnp.float32)
            for kw in range(3):
                # input column w' = w + kw - 1  ->  eye offset k = 1 - kw
                acc = acc + jnp.kron(jnp.eye(W, W, k=1 - kw, dtype=jnp.float32),
                                     wt[kh, kw].astype(jnp.float32))
            mats.append(acc)
        return jnp.stack(mats, axis=0).astype(matmul_dtype)

    b1k = banded(w1)
    b2k = banded(w2)
    # Sums each channel's W lane replicas (and re-broadcasts) when applied on
    # the right of a (?, W*C) row vector.
    avg = jnp.kron(jnp.ones((W, W), jnp.float32), jnp.eye(Cout, dtype=jnp.float32))
    tile_lane = lambda v: jnp.tile(v.astype(jnp.float32), W).reshape(1, WCout)
    g1l, b1l, g2l, b2l = map(tile_lane, (g1, b1, g2, b2))

    vmem = pl.BlockSpec(memory_space=pltpu.MemorySpace.VMEM)
    out2d = pl.pallas_call(
        functools.partial(basic_block_kernel, H=H, W=W),
        out_shape=jax.ShapeDtypeStruct((M, WCout), jnp.float32),
        in_specs=[vmem] * 8,
        out_specs=vmem,
    )(x2d, b1k, b2k, avg, g1l, b1l, g2l, b2l)
    return out2d.reshape(N, H, W, Cout)


def basic_block_nchw(x_nchw, w1, g1, b1, w2, g2, b2, *, matmul_dtype=jnp.float32):
    """PyTorch-facing wrapper: NCHW in, NCHW out."""
    x_nhwc = jnp.transpose(x_nchw, (0, 2, 3, 1))
    y_nhwc = basic_block_nhwc(x_nhwc, w1, g1, b1, w2, g2, b2,
                              matmul_dtype=matmul_dtype)
    return jnp.transpose(y_nhwc, (0, 3, 1, 2))


def ref_basic_block_nhwc(x, w1, g1, b1, w2, g2, b2):
    """Pure-JAX reference (NHWC) mirroring the PyTorch forward."""
    def conv(h, w):
        return lax.conv_general_dilated(
            h, w, window_strides=(1, 1), padding="SAME",
            dimension_numbers=("NHWC", "HWIO", "NHWC"))

    def bn(h, g, b):
        mu = jnp.mean(h, axis=(0, 1, 2), keepdims=True)
        var = jnp.mean((h - mu) ** 2, axis=(0, 1, 2), keepdims=True)
        return (h - mu) * lax.rsqrt(var + EPS) * g + b

    h = jax.nn.relu(bn(conv(x, w1), g1, b1))
    h = bn(conv(h, w2), g2, b2)
    return jax.nn.relu(h + x)


if __name__ == "__main__":
    N, C, H, W = 2, 8, 16, 16   # batch=2, in_planes=planes=8, 16x16 spatial

    key = jax.random.PRNGKey(0)
    kx, kw1, kw2, kg1, kb1, kg2, kb2 = jax.random.split(key, 7)

    x_nchw = jax.random.normal(kx, (N, C, H, W), jnp.float32)      # PyTorch layout
    w1 = jax.random.normal(kw1, (3, 3, C, C), jnp.float32) * 0.1   # HWIO
    w2 = jax.random.normal(kw2, (3, 3, C, C), jnp.float32) * 0.1
    g1 = 1.0 + 0.1 * jax.random.normal(kg1, (C,), jnp.float32)
    b1 = 0.1 * jax.random.normal(kb1, (C,), jnp.float32)
    g2 = 1.0 + 0.1 * jax.random.normal(kg2, (C,), jnp.float32)
    b2 = 0.1 * jax.random.normal(kb2, (C,), jnp.float32)

    # f32 MXU path — bit-faithful to the PyTorch/f32 forward.
    out = jax.block_until_ready(basic_block_nchw(x_nchw, w1, g1, b1, w2, g2, b2))

    x_nhwc = jnp.transpose(x_nchw, (0, 2, 3, 1))
    ref = jnp.transpose(ref_basic_block_nhwc(x_nhwc, w1, g1, b1, w2, g2, b2),
                        (0, 3, 1, 2))
    assert out.shape == (N, C, H, W)
    assert jnp.allclose(out, ref, rtol=1e-3, atol=1e-3), "f32 kernel mismatch vs reference"

    # bf16-MXU path (recommended on v5e/v6e/v7x): bf16 matmul inputs, f32
    # accumulation, f32 element-wise math.  Looser tolerance for bf16 rounding.
    out_bf16 = jax.block_until_ready(
        basic_block_nchw(x_nchw, w1, g1, b1, w2, g2, b2, matmul_dtype=jnp.bfloat16))
    assert jnp.allclose(out_bf16, ref, rtol=5e-2, atol=5e-2), "bf16 kernel mismatch vs reference"

    print("KERNEL_OK")
</pallas_src>

<mosaic_0001>
module attributes {stable_mosaic.version = 11 : i64} {
  func.func @basic_block_kernel(%arg0: memref<32x128xf32, #tpu.memory_space<vmem>>, %arg1: memref<3x128x128xf32, #tpu.memory_space<vmem>>, %arg2: memref<3x128x128xf32, #tpu.memory_space<vmem>>, %arg3: memref<128x128xf32, #tpu.memory_space<vmem>>, %arg4: memref<1x128xf32, #tpu.memory_space<vmem>>, %arg5: memref<1x128xf32, #tpu.memory_space<vmem>>, %arg6: memref<1x128xf32, #tpu.memory_space<vmem>>, %arg7: memref<1x128xf32, #tpu.memory_space<vmem>>, %arg8: memref<32x128xf32, #tpu.memory_space<vmem>>) attributes {dimension_semantics = [], scalar_prefetch = 0 : i64, scratch_operands = 0 : i64, tpu.core_type = #tpu.core_type<tc>} {
    %0 = tpu.iota {dimensions = array<i32: 0>} : vector<32x128xi32>
    %c16_i32 = arith.constant 16 : i32
    %c0_i32 = arith.constant 0 : i32
    %1 = arith.cmpi eq, %c16_i32, %c0_i32 : i32
    %c1_i32 = arith.constant 1 : i32
    %2 = arith.select %1, %c1_i32, %c16_i32 : i32
    %3 = vector.broadcast %2 : i32 to vector<32x128xi32>
    %4 = arith.remsi %0, %3 : vector<32x128xi32>
    %c0_i32_0 = arith.constant 0 : i32
    %5 = vector.broadcast %c0_i32_0 : i32 to vector<32x128xi32>
    %6 = arith.cmpi ne, %4, %5 : vector<32x128xi32>
    %c0_i32_1 = arith.constant 0 : i32
    %7 = vector.broadcast %c0_i32_1 : i32 to vector<32x128xi32>
    %8 = arith.cmpi slt, %4, %7 : vector<32x128xi32>
    %c0_i32_2 = arith.constant 0 : i32
    %9 = arith.cmpi slt, %2, %c0_i32_2 : i32
    %10 = vector.broadcast %9 : i1 to vector<32x128xi1>
    %11 = vector.broadcast %10 : vector<32x128xi1> to vector<32x128xi1>
    %12 = arith.xori %8, %11 : vector<32x128xi1>
    %13 = arith.andi %12, %6 : vector<32x128xi1>
    %14 = vector.broadcast %2 : i32 to vector<32x128xi32>
    %15 = arith.addi %4, %14 : vector<32x128xi32>
    %16 = arith.select %13, %15, %4 : vector<32x128xi1>, vector<32x128xi32>
    %c0 = arith.constant 0 : index
    %c0_3 = arith.constant 0 : index
    %17 = vector.load %arg0[%c0, %c0_3] : memref<32x128xf32, #tpu.memory_space<vmem>>, vector<32x128xf32>
    %cst = arith.constant 0.000000e+00 : f32
    %18 = vector.broadcast %cst : f32 to vector<32x128xf32>
    %cst_4 = arith.constant 0.000000e+00 : f32
    %19 = vector.broadcast %cst_4 : f32 to vector<1x128xf32>
    %20 = vector.extract_strided_slice %17 {offsets = [0, 0], sizes = [31, 128], strides = [1, 1]} : vector<32x128xf32> to vector<31x128xf32>
    %21 = tpu.concatenate %19, %20 in 0 : vector<1x128xf32>, vector<31x128xf32> -> vector<32x128xf32>
    %c1_i32_5 = arith.constant 1 : i32
    %22 = vector.broadcast %c1_i32_5 : i32 to vector<32x128xi32>
    %23 = arith.cmpi sge, %16, %22 : vector<32x128xi32>
    %cst_6 = arith.constant 0.000000e+00 : f32
    %24 = vector.broadcast %cst_6 : f32 to vector<32x128xf32>
    %25 = arith.select %23, %21, %24 : vector<32x128xi1>, vector<32x128xf32>
    %c0_7 = arith.constant 0 : index
    %c0_8 = arith.constant 0 : index
    %c0_9 = arith.constant 0 : index
    %26 = vector.load %arg1[%c0_7, %c0_8, %c0_9] : memref<3x128x128xf32, #tpu.memory_space<vmem>>, vector<1x128x128xf32>
    %27 = vector.shape_cast %26 : vector<1x128x128xf32> to vector<128x128xf32>
    %cst_10 = arith.constant dense<0.000000e+00> : vector<32x128xf32>
    %28 = tpu.matmul %25, %27, %cst_10 {dimension_numbers = #tpu.dot_dimension_numbers<[1], [0], [0], [1], [0, 0, 1, 1], [], []>} : vector<32x128xf32>, vector<128x128xf32>, vector<32x128xf32> -> vector<32x128xf32>
    %29 = arith.addf %18, %28 : vector<32x128xf32>
    %c1 = arith.constant 1 : index
    %c0_11 = arith.constant 0 : index
    %c0_12 = arith.constant 0 : index
    %30 = vector.load %arg1[%c1, %c0_11, %c0_12] : memref<3x128x128xf32, #tpu.memory_space<vmem>>, vector<1x128x128xf32>
    %31 = vector.shape_cast %30 : vector<1x128x128xf32> to vector<128x128xf32>
    %cst_13 = arith.constant dense<0.000000e+00> : vector<32x128xf32>
    %32 = tpu.matmul %17, %31, %cst_13 {dimension_numbers = #tpu.dot_dimension_numbers<[1], [0], [0], [1], [0, 0, 1, 1], [], []>} : vector<32x128xf32>, vector<128x128xf32>, vector<32x128xf32> -> vector<32x128xf32>
    %33 = arith.addf %29, %32 : vector<32x128xf32>
    %cst_14 = arith.constant 0.000000e+00 : f32
    %34 = vector.broadcast %cst_14 : f32 to vector<1x128xf32>
    %35 = vector.extract_strided_slice %17 {offsets = [1, 0], sizes = [31, 128], strides = [1, 1]} : vector<32x128xf32> to vector<31x128xf32>
    %36 = tpu.concatenate %35, %34 in 0 : vector<31x128xf32>, vector<1x128xf32> -> vector<32x128xf32>
    %c15_i32 = arith.constant 15 : i32
    %37 = vector.broadcast %c15_i32 : i32 to vector<32x128xi32>
    %38 = arith.cmpi slt, %16, %37 : vector<32x128xi32>
    %cst_15 = arith.constant 0.000000e+00 : f32
    %39 = vector.broadcast %cst_15 : f32 to vector<32x128xf32>
    %40 = arith.select %38, %36, %39 : vector<32x128xi1>, vector<32x128xf32>
    %c2 = arith.constant 2 : index
    %c0_16 = arith.constant 0 : index
    %c0_17 = arith.constant 0 : index
    %41 = vector.load %arg1[%c2, %c0_16, %c0_17] : memref<3x128x128xf32, #tpu.memory_space<vmem>>, vector<1x128x128xf32>
    %42 = vector.shape_cast %41 : vector<1x128x128xf32> to vector<128x128xf32>
    %cst_18 = arith.constant dense<0.000000e+00> : vector<32x128xf32>
    %43 = tpu.matmul %40, %42, %cst_18 {dimension_numbers = #tpu.dot_dimension_numbers<[1], [0], [0], [1], [0, 0, 1, 1], [], []>} : vector<32x128xf32>, vector<128x128xf32>, vector<32x128xf32> -> vector<32x128xf32>
    %44 = arith.addf %33, %43 : vector<32x128xf32>
    %c0_19 = arith.constant 0 : index
    %c0_20 = arith.constant 0 : index
    %45 = vector.load %arg4[%c0_19, %c0_20] : memref<1x128xf32, #tpu.memory_space<vmem>>, vector<1x128xf32>
    %c0_21 = arith.constant 0 : index
    %c0_22 = arith.constant 0 : index
    %46 = vector.load %arg5[%c0_21, %c0_22] : memref<1x128xf32, #tpu.memory_space<vmem>>, vector<1x128xf32>
    %cst_23 = arith.constant dense<0.000000e+00> : vector<128xf32>
    %47 = vector.multi_reduction <add>, %44, %cst_23 [0] : vector<32x128xf32> to vector<128xf32>
    %48 = vector.shape_cast %47 : vector<128xf32> to vector<1x128xf32>
    %49 = arith.mulf %44, %44 : vector<32x128xf32>
    %cst_24 = arith.constant dense<0.000000e+00> : vector<128xf32>
    %50 = vector.multi_reduction <add>, %49, %cst_24 [0] : vector<32x128xf32> to vector<128xf32>
    %51 = vector.shape_cast %50 : vector<128xf32> to vector<1x128xf32>
    %52 = tpu.concatenate %48, %51 in 0 : vector<1x128xf32>, vector<1x128xf32> -> vector<2x128xf32>
    %c0_25 = arith.constant 0 : index
    %c0_26 = arith.constant 0 : index
    %53 = vector.load %arg3[%c0_25, %c0_26] : memref<128x128xf32, #tpu.memory_space<vmem>>, vector<128x128xf32>
    %cst_27 = arith.constant dense<0.000000e+00> : vector<2x128xf32>
    %54 = tpu.matmul %52, %53, %cst_27 {dimension_numbers = #tpu.dot_dimension_numbers<[1], [0], [0], [1], [0, 0, 1, 1], [], []>} : vector<2x128xf32>, vector<128x128xf32>, vector<2x128xf32> -> vector<2x128xf32>
    %cst_28 = arith.constant 0.001953125 : f32
    %55 = vector.broadcast %cst_28 : f32 to vector<2x128xf32>
    %56 = arith.mulf %54, %55 : vector<2x128xf32>
    %57 = vector.extract_strided_slice %56 {offsets = [0, 0], sizes = [1, 128], strides = [1, 1]} : vector<2x128xf32> to vector<1x128xf32>
    %58 = vector.extract_strided_slice %56 {offsets = [1, 0], sizes = [1, 128], strides = [1, 1]} : vector<2x128xf32> to vector<1x128xf32>
    %59 = arith.mulf %57, %57 : vector<1x128xf32>
    %60 = arith.subf %58, %59 : vector<1x128xf32>
    %cst_29 = arith.constant 9.99999974E-6 : f32
    %61 = vector.broadcast %cst_29 : f32 to vector<1x128xf32>
    %62 = arith.addf %60, %61 : vector<1x128xf32>
    %63 = math.rsqrt %62 : vector<1x128xf32>
    %64 = arith.mulf %45, %63 : vector<1x128xf32>
    %65 = arith.mulf %57, %64 : vector<1x128xf32>
    %66 = arith.subf %46, %65 : vector<1x128xf32>
    %67 = vector.broadcast %64 : vector<1x128xf32> to vector<32x128xf32>
    %68 = arith.mulf %44, %67 : vector<32x128xf32>
    %69 = vector.broadcast %66 : vector<1x128xf32> to vector<32x128xf32>
    %70 = arith.addf %68, %69 : vector<32x128xf32>
    %cst_30 = arith.constant 0.000000e+00 : f32
    %71 = vector.broadcast %cst_30 : f32 to vector<32x128xf32>
    %72 = arith.maximumf %70, %71 : vector<32x128xf32>
    %cst_31 = arith.constant 0.000000e+00 : f32
    %73 = vector.broadcast %cst_31 : f32 to vector<32x128xf32>
    %cst_32 = arith.constant 0.000000e+00 : f32
    %74 = vector.broadcast %cst_32 : f32 to vector<1x128xf32>
    %75 = vector.extract_strided_slice %72 {offsets = [0, 0], sizes = [31, 128], strides = [1, 1]} : vector<32x128xf32> to vector<31x128xf32>
    %76 = tpu.concatenate %74, %75 in 0 : vector<1x128xf32>, vector<31x128xf32> -> vector<32x128xf32>
    %c1_i32_33 = arith.constant 1 : i32
    %77 = vector.broadcast %c1_i32_33 : i32 to vector<32x128xi32>
    %78 = arith.cmpi sge, %16, %77 : vector<32x128xi32>
    %cst_34 = arith.constant 0.000000e+00 : f32
    %79 = vector.broadcast %cst_34 : f32 to vector<32x128xf32>
    %80 = arith.select %78, %76, %79 : vector<32x128xi1>, vector<32x128xf32>
    %c0_35 = arith.constant 0 : index
    %c0_36 = arith.constant 0 : index
    %c0_37 = arith.constant 0 : index
    %81 = vector.load %arg2[%c0_35, %c0_36, %c0_37] : memref<3x128x128xf32, #tpu.memory_space<vmem>>, vector<1x128x128xf32>
    %82 = vector.shape_cast %81 : vector<1x128x128xf32> to vector<128x128xf32>
    %cst_38 = arith.constant dense<0.000000e+00> : vector<32x128xf32>
    %83 = tpu.matmul %80, %82, %cst_38 {dimension_numbers = #tpu.dot_dimension_numbers<[1], [0], [0], [1], [0, 0, 1, 1], [], []>} : vector<32x128xf32>, vector<128x128xf32>, vector<32x128xf32> -> vector<32x128xf32>
    %84 = arith.addf %73, %83 : vector<32x128xf32>
    %c1_39 = arith.constant 1 : index
    %c0_40 = arith.constant 0 : index
    %c0_41 = arith.constant 0 : index
    %85 = vector.load %arg2[%c1_39, %c0_40, %c0_41] : memref<3x128x128xf32, #tpu.memory_space<vmem>>, vector<1x128x128xf32>
    %86 = vector.shape_cast %85 : vector<1x128x128xf32> to vector<128x128xf32>
    %cst_42 = arith.constant dense<0.000000e+00> : vector<32x128xf32>
    %87 = tpu.matmul %72, %86, %cst_42 {dimension_numbers = #tpu.dot_dimension_numbers<[1], [0], [0], [1], [0, 0, 1, 1], [], []>} : vector<32x128xf32>, vector<128x128xf32>, vector<32x128xf32> -> vector<32x128xf32>
    %88 = arith.addf %84, %87 : vector<32x128xf32>
    %cst_43 = arith.constant 0.000000e+00 : f32
    %89 = vector.broadcast %cst_43 : f32 to vector<1x128xf32>
    %90 = vector.extract_strided_slice %72 {offsets = [1, 0], sizes = [31, 128], strides = [1, 1]} : vector<32x128xf32> to vector<31x128xf32>
    %91 = tpu.concatenate %90, %89 in 0 : vector<31x128xf32>, vector<1x128xf32> -> vector<32x128xf32>
    %c15_i32_44 = arith.constant 15 : i32
    %92 = vector.broadcast %c15_i32_44 : i32 to vector<32x128xi32>
    %93 = arith.cmpi slt, %16, %92 : vector<32x128xi32>
    %cst_45 = arith.constant 0.000000e+00 : f32
    %94 = vector.broadcast %cst_45 : f32 to vector<32x128xf32>
    %95 = arith.select %93, %91, %94 : vector<32x128xi1>, vector<32x128xf32>
    %c2_46 = arith.constant 2 : index
    %c0_47 = arith.constant 0 : index
    %c0_48 = arith.constant 0 : index
    %96 = vector.load %arg2[%c2_46, %c0_47, %c0_48] : memref<3x128x128xf32, #tpu.memory_space<vmem>>, vector<1x128x128xf32>
    %97 = vector.shape_cast %96 : vector<1x128x128xf32> to vector<128x128xf32>
    %cst_49 = arith.constant dense<0.000000e+00> : vector<32x128xf32>
    %98 = tpu.matmul %95, %97, %cst_49 {dimension_numbers = #tpu.dot_dimension_numbers<[1], [0], [0], [1], [0, 0, 1, 1], [], []>} : vector<32x128xf32>, vector<128x128xf32>, vector<32x128xf32> -> vector<32x128xf32>
    %99 = arith.addf %88, %98 : vector<32x128xf32>
    %c0_50 = arith.constant 0 : index
    %c0_51 = arith.constant 0 : index
    %100 = vector.load %arg6[%c0_50, %c0_51] : memref<1x128xf32, #tpu.memory_space<vmem>>, vector<1x128xf32>
    %c0_52 = arith.constant 0 : index
    %c0_53 = arith.constant 0 : index
    %101 = vector.load %arg7[%c0_52, %c0_53] : memref<1x128xf32, #tpu.memory_space<vmem>>, vector<1x128xf32>
    %cst_54 = arith.constant dense<0.000000e+00> : vector<128xf32>
    %102 = vector.multi_reduction <add>, %99, %cst_54 [0] : vector<32x128xf32> to vector<128xf32>
    %103 = vector.shape_cast %102 : vector<128xf32> to vector<1x128xf32>
    %104 = arith.mulf %99, %99 : vector<32x128xf32>
    %cst_55 = arith.constant dense<0.000000e+00> : vector<128xf32>
    %105 = vector.multi_reduction <add>, %104, %cst_55 [0] : vector<32x128xf32> to vector<128xf32>
    %106 = vector.shape_cast %105 : vector<128xf32> to vector<1x128xf32>
    %107 = tpu.concatenate %103, %106 in 0 : vector<1x128xf32>, vector<1x128xf32> -> vector<2x128xf32>
    %c0_56 = arith.constant 0 : index
    %c0_57 = arith.constant 0 : index
    %108 = vector.load %arg3[%c0_56, %c0_57] : memref<128x128xf32, #tpu.memory_space<vmem>>, vector<128x128xf32>
    %cst_58 = arith.constant dense<0.000000e+00> : vector<2x128xf32>
    %109 = tpu.matmul %107, %108, %cst_58 {dimension_numbers = #tpu.dot_dimension_numbers<[1], [0], [0], [1], [0, 0, 1, 1], [], []>} : vector<2x128xf32>, vector<128x128xf32>, vector<2x128xf32> -> vector<2x128xf32>
    %cst_59 = arith.constant 0.001953125 : f32
    %110 = vector.broadcast %cst_59 : f32 to vector<2x128xf32>
    %111 = arith.mulf %109, %110 : vector<2x128xf32>
    %112 = vector.extract_strided_slice %111 {offsets = [0, 0], sizes = [1, 128], strides = [1, 1]} : vector<2x128xf32> to vector<1x128xf32>
    %113 = vector.extract_strided_slice %111 {offsets = [1, 0], sizes = [1, 128], strides = [1, 1]} : vector<2x128xf32> to vector<1x128xf32>
    %114 = arith.mulf %112, %112 : vector<1x128xf32>
    %115 = arith.subf %113, %114 : vector<1x128xf32>
    %cst_60 = arith.constant 9.99999974E-6 : f32
    %116 = vector.broadcast %cst_60 : f32 to vector<1x128xf32>
    %117 = arith.addf %115, %116 : vector<1x128xf32>
    %118 = math.rsqrt %117 : vector<1x128xf32>
    %119 = arith.mulf %100, %118 : vector<1x128xf32>
    %120 = arith.mulf %112, %119 : vector<1x128xf32>
    %121 = arith.subf %101, %120 : vector<1x128xf32>
    %122 = vector.broadcast %119 : vector<1x128xf32> to vector<32x128xf32>
    %123 = arith.mulf %99, %122 : vector<32x128xf32>
    %124 = vector.broadcast %121 : vector<1x128xf32> to vector<32x128xf32>
    %125 = arith.addf %123, %124 : vector<32x128xf32>
    %126 = arith.addf %125, %17 : vector<32x128xf32>
    %cst_61 = arith.constant 0.000000e+00 : f32
    %127 = vector.broadcast %cst_61 : f32 to vector<32x128xf32>
    %128 = arith.maximumf %126, %127 : vector<32x128xf32>
    %c0_62 = arith.constant 0 : index
    %c0_63 = arith.constant 0 : index
    %129 = vector.load %arg8[%c0_62, %c0_63] : memref<32x128xf32, #tpu.memory_space<vmem>>, vector<32x128xf32>
    tpu.vector_store %arg8[%c0_62, %c0_63], %128 {strides = array<i32>} : memref<32x128xf32, #tpu.memory_space<vmem>>, vector<32x128xf32>,
    return
  }
}

</mosaic_0001>

<llo_original>
// kernel: tpu_custom_call.1
$region0: #{tpu_custom_call.1}
  #allocation0 [shape = 'u32[]', space=smem, size = 0x4, offset = 0x4, fixed_abs, tag = 'smem constant byte address 0x4 - core index']
  #allocation1 [shape = 'u32[144,128]{1,0:T(1,128)}', space=vmem, size = 0x12000, scoped, tag = 'internal scratch']
  %s0 = inlined_call_operand.hbm [shape: f32[32,128], index: 0, kind: input, shape index: {}]
  %s1 = inlined_call_operand.hbm [shape: f32[3,128,128], index: 1, kind: input, shape index: {}]
  %s2 = inlined_call_operand.hbm [shape: f32[3,128,128], index: 2, kind: input, shape index: {}]
  %s3 = inlined_call_operand.hbm [shape: f32[128,128], index: 3, kind: input, shape index: {}]
  %s4 = inlined_call_operand.vmem [shape: f32[1,128], index: 4, kind: input, shape index: {}]
  %s5 = inlined_call_operand.vmem [shape: f32[1,128], index: 5, kind: input, shape index: {}]
  %s6 = inlined_call_operand.vmem [shape: f32[1,128], index: 6, kind: input, shape index: {}]
  %s7 = inlined_call_operand.vmem [shape: f32[1,128], index: 7, kind: input, shape index: {}]
  %s8 = inlined_call_operand.hbm [shape: f32[32,128], index: 8, kind: output, shape index: {}]
  %s9 = sld [smem:[#allocation0]]
  $region58: #{tpu_custom_call.1} parent=0
    _
  %s11 = ssub.s32 1, %s9
  %s12 = scalar_select 0, %s11, %s9
  $region1: #{tpu_custom_call.1} parent=0
    #allocation2 [shape = 'u8[16384]{0}', space=vmem, size = 0x4000, scoped, tag = 'input window, operand 0, single buffered']
    #allocation3 [shape = 's32[1]{0}', space=sflag, size = 0x4, scoped, tag = 'scoped memory for tpu_custom_call.1']
    #allocation4 [shape = 's32[1]{0}', space=sflag, size = 0x4, scoped, tag = 'scoped memory for tpu_custom_call.1']
    #allocation5 [shape = 'u8[196608]{0}', space=vmem, size = 0x30000, scoped, tag = 'input window, operand 1, single buffered']
    #allocation6 [shape = 's32[1]{0}', space=sflag, size = 0x4, scoped, tag = 'scoped memory for tpu_custom_call.1']
    #allocation7 [shape = 'u8[196608]{0}', space=vmem, size = 0x30000, scoped, tag = 'input window, operand 2, single buffered']
    #allocation8 [shape = 'u8[65536]{0}', space=vmem, size = 0x10000, scoped, tag = 'input window, operand 3, single buffered']
    #allocation9 [shape = 's32[1]{0}', space=sflag, size = 0x4, scoped, tag = 'scoped memory for tpu_custom_call.1']
    #allocation10 [shape = 'u8[16384]{0}', space=vmem, size = 0x4000, scoped, tag = 'output window, operand 0, single buffered']
    %13 = vsyncpa [#allocation3], 0
    %14 = vsyncpa [#allocation6], 0
    %15 = vsyncpa [#allocation9], 0
    %16 = vsyncpa [#allocation4], 0
    // Predicated region
    $region2: #{tpu_custom_call.1} parent=1 // pred_check
      _
    $region3: #{tpu_custom_call.1} parent=1 // pred_check_branch
      %18 = sbr.rel (0) target = $region5
    $region4: #{tpu_custom_call.1} parent=1 // pred_region
      %s20 = ssub.s32 512, 512
      %21 = vsyncadd [#allocation3], %s20
      %s22 = sshll.u32 [#allocation2], 4
      %s23 = int_to_ptr.vmem [resolvable:$true] %s22
      %28 = dma.hbm_to_vmem [thread:$0]  %s0, 512, %s23, [#allocation3], 128, 128, 8
    $region5: #{tpu_custom_call.1} parent=1 // pred_fallthru
      _
    // Predicated region
    $region6: #{tpu_custom_call.1} parent=1 // pred_check
      _
    $region7: #{tpu_custom_call.1} parent=1 // pred_check_branch
      %30 = sbr.rel (0) target = $region9
    $region8: #{tpu_custom_call.1} parent=1 // pred_region
      %s32 = ssub.s32 6144, 6144
      %33 = vsyncadd [#allocation6], %s32
      %s34 = sshll.u32 [#allocation5], 4
      %s35 = int_to_ptr.vmem [resolvable:$true] %s34
      %40 = dma.hbm_to_vmem [thread:$0]  %s1, 6144, %s35, [#allocation6], 128, 128, 8
    $region9: #{tpu_custom_call.1} parent=1 // pred_fallthru
      _
    // Predicated region
    $region10: #{tpu_custom_call.1} parent=1 // pred_check
      _
    $region11: #{tpu_custom_call.1} parent=1 // pred_check_branch
      %42 = sbr.rel (0) target = $region13
    $region12: #{tpu_custom_call.1} parent=1 // pred_region
      %s44 = ssub.s32 6144, 6144
      %45 = vsyncadd [#allocation6], %s44
      %s46 = sshll.u32 [#allocation7], 4
      %s47 = int_to_ptr.vmem [resolvable:$true] %s46
      %52 = dma.hbm_to_vmem [thread:$0]  %s2, 6144, %s47, [#allocation6], 128, 128, 8
    $region13: #{tpu_custom_call.1} parent=1 // pred_fallthru
      _
    // Predicated region
    $region14: #{tpu_custom_call.1} parent=1 // pred_check
      _
    $region15: #{tpu_custom_call.1} parent=1 // pred_check_branch
      %54 = sbr.rel (0) target = $region17
    $region16: #{tpu_custom_call.1} parent=1 // pred_region
      %s56 = ssub.s32 2048, 2048
      %57 = vsyncadd [#allocation9], %s56
      %s58 = sshll.u32 [#allocation8], 4
      %s59 = int_to_ptr.vmem [resolvable:$true] %s58
      %64 = dma.hbm_to_vmem [thread:$0]  %s3, 2048, %s59, [#allocation9], 128, 128, 8
    $region17: #{tpu_custom_call.1} parent=1 // pred_fallthru
      _
    // Predicated region
    $region18: #{tpu_custom_call.1} parent=1 // pred_check
      _
    $region19: #{tpu_custom_call.1} parent=1 // pred_check_branch
      %66 = sbr.rel (0) target = $region21
    $region20: #{tpu_custom_call.1} parent=1 // pred_region
      _
    $region21: #{tpu_custom_call.1} parent=1 // pred_fallthru
      _
    // Predicated region
    $region22: #{tpu_custom_call.1} parent=1 // pred_check
      _
    $region23: #{tpu_custom_call.1} parent=1 // pred_check_branch
      %68 = sbr.rel (0) target = $region25
    $region24: #{tpu_custom_call.1} parent=1 // pred_region
      _
    $region25: #{tpu_custom_call.1} parent=1 // pred_fallthru
      _
    // Predicated region
    $region26: #{tpu_custom_call.1} parent=1 // pred_check
      _
    $region27: #{tpu_custom_call.1} parent=1 // pred_check_branch
      %70 = sbr.rel (0) target = $region29
    $region28: #{tpu_custom_call.1} parent=1 // pred_region
      _
    $region29: #{tpu_custom_call.1} parent=1 // pred_fallthru
      _
    // Predicated region
    $region30: #{tpu_custom_call.1} parent=1 // pred_check
      _
    $region31: #{tpu_custom_call.1} parent=1 // pred_check_branch
      %72 = sbr.rel (0) target = $region33
    $region32: #{tpu_custom_call.1} parent=1 // pred_region
      _
    $region33: #{tpu_custom_call.1} parent=1 // pred_fallthru
      _
    // Predicated region
    $region34: #{tpu_custom_call.1} parent=1 // pred_check
      _
    $region35: #{tpu_custom_call.1} parent=1 // pred_check_branch
      %74 = sbr.rel (0) target = $region37
    $region36: #{tpu_custom_call.1} parent=1 // pred_region
      %75 = dma.done [#allocation3], 512
    $region37: #{tpu_custom_call.1} parent=1 // pred_fallthru
      _
    // Predicated region
    $region38: #{tpu_custom_call.1} parent=1 // pred_check
      _
    $region39: #{tpu_custom_call.1} parent=1 // pred_check_branch
      %77 = sbr.rel (0) target = $region41
    $region40: #{tpu_custom_call.1} parent=1 // pred_region
      %78 = dma.done [#allocation6], 6144
    $region41: #{tpu_custom_call.1} parent=1 // pred_fallthru
      _
    // Predicated region
    $region42: #{tpu_custom_call.1} parent=1 // pred_check
      _
    $region43: #{tpu_custom_call.1} parent=1 // pred_check_branch
      %80 = sbr.rel (0) target = $region45
    $region44: #{tpu_custom_call.1} parent=1 // pred_region
      %81 = dma.done [#allocation6], 6144
    $region45: #{tpu_custom_call.1} parent=1 // pred_fallthru
      _
    // Predicated region
    $region46: #{tpu_custom_call.1} parent=1 // pred_check
      _
    $region47: #{tpu_custom_call.1} parent=1 // pred_check_branch
      %83 = sbr.rel (0) target = $region49
    $region48: #{tpu_custom_call.1} parent=1 // pred_region
      %84 = dma.done [#allocation9], 2048
    $region49: #{tpu_custom_call.1} parent=1 // pred_fallthru
      _
    %v85 = vlaneseq
    %v86 = vshrl.u32 %v85, 7
    %v87 = vadd.s32 %v86, 8
    %v88 = vadd.s32 %v86, 16
    %v89 = vadd.s32 %v86, 24
    %vm90 = vcmp.lt.s32.totalorder %v86, 0
    %v91 = vsub.s32 0, %v86
    %v92 = vsel %vm90, %v91, %v86
    %v93 = vshrl.u32 %v92, 4
    %v94 = vand.u32 %v92, 15
    %v95 = vsub.s32 0, %v94
    %v96 = vsel %vm90, %v95, %v94
    %vm97 = vcmp.lt.s32.totalorder %v87, 0
    %v98 = vsub.s32 0, %v87
    %v99 = vsel %vm97, %v98, %v87
    %v100 = vshrl.u32 %v99, 4
    %v101 = vand.u32 %v99, 15
    %v102 = vsub.s32 0, %v101
    %v103 = vsel %vm97, %v102, %v101
    %vm104 = vcmp.lt.s32.totalorder %v88, 0
    %v105 = vsub.s32 0, %v88
    %v106 = vsel %vm104, %v105, %v88
    %v107 = vshrl.u32 %v106, 4
    %v108 = vand.u32 %v106, 15
    %v109 = vsub.s32 0, %v108
    %v110 = vsel %vm104, %v109, %v108
    %vm111 = vcmp.lt.s32.totalorder %v89, 0
    %v112 = vsub.s32 0, %v89
    %v113 = vsel %vm111, %v112, %v89
    %v114 = vshrl.u32 %v113, 4
    %v115 = vand.u32 %v113, 15
    %v116 = vsub.s32 0, %v115
    %v117 = vsel %vm111, %v116, %v115
    %vm118 = vcmp.ne.s32.totalorder %v96, 0
    %vm119 = vcmp.ne.s32.totalorder %v103, 0
    %vm120 = vcmp.ne.s32.totalorder %v110, 0
    %vm121 = vcmp.ne.s32.totalorder %v117, 0
    %vm122 = vcmp.lt.s32.totalorder %v96, 0
    %vm123 = vcmp.lt.s32.totalorder %v103, 0
    %vm124 = vcmp.lt.s32.totalorder %v110, 0
    %vm125 = vcmp.lt.s32.totalorder %v117, 0
    %vm126 = vmand %vm122, %vm118
    %vm127 = vmand %vm123, %vm119
    %vm128 = vmand %vm124, %vm120
    %vm129 = vmand %vm125, %vm121
    %v130 = vadd.s32 %v96, 16
    %v131 = vadd.s32 %v103, 16
    %v132 = vadd.s32 %v110, 16
    %v133 = vadd.s32 %v117, 16
    %v134 = vsel %vm126, %v130, %v96
    %v135 = vsel %vm127, %v131, %v103
    %v136 = vsel %vm128, %v132, %v110
    %v137 = vsel %vm129, %v133, %v117
    %v138 = vld [vmem:[#allocation2] sm:$0xff]
    %v139 = vld [vmem:[#allocation2 + $0x8] sm:$0xff]
    %v140 = vld [vmem:[#allocation2 + $0x10] sm:$0xff]
    %v141 = vld [vmem:[#allocation2 + $0x18] sm:$0xff]
    %vm146 = vcmask 1040384
    %v147 = vrot.slane %v138, 7
    %v148 = vrot.slane %v139, 7
    %v149 = vsel %vm146, %v147, %v148
    %v150 = vrot.slane %v140, 7
    %v151 = vsel %vm146, %v148, %v150
    %v152 = vrot.slane %v141, 7
    %v153 = vsel %vm146, %v150, %v152
    %v158 = vsel %vm146, 0.0, %v147
    %vm159 = vcmp.ge.s32.totalorder %v134, 1
    %vm160 = vcmp.ge.s32.totalorder %v135, 1
    %vm161 = vcmp.ge.s32.totalorder %v136, 1
    %vm162 = vcmp.ge.s32.totalorder %v137, 1
    %v163 = vsel %vm159, %v158, 0.0
    %v164 = vsel %vm160, %v149, 0.0
    %v165 = vsel %vm161, %v151, 0.0
    %v166 = vsel %vm162, %v153, 0.0
    %v167 = vld [vmem:[#allocation5] sm:$0xff]
    %v168 = vld [vmem:[#allocation5 + $0x8] sm:$0xff]
    %v169 = vld [vmem:[#allocation5 + $0x10] sm:$0xff]
    %v170 = vld [vmem:[#allocation5 + $0x18] sm:$0xff]
    %v171 = vld [vmem:[#allocation5 + $0x20] sm:$0xff]
    %v172 = vld [vmem:[#allocation5 + $0x28] sm:$0xff]
    %v173 = vld [vmem:[#allocation5 + $0x30] sm:$0xff]
    %v174 = vld [vmem:[#allocation5 + $0x38] sm:$0xff]
    %v175 = vld [vmem:[#allocation5 + $0x40] sm:$0xff]
    %v176 = vld [vmem:[#allocation5 + $0x48] sm:$0xff]
    %v177 = vld [vmem:[#allocation5 + $0x50] sm:$0xff]
    %v178 = vld [vmem:[#allocation5 + $0x58] sm:$0xff]
    %v179 = vld [vmem:[#allocation5 + $0x60] sm:$0xff]
    %v180 = vld [vmem:[#allocation5 + $0x68] sm:$0xff]
    %v181 = vld [vmem:[#allocation5 + $0x70] sm:$0xff]
    %v182 = vld [vmem:[#allocation5 + $0x78] sm:$0xff]
    %s183 = scalar_lea.vmem [#allocation5], 128
    %v184 = vld [vmem:[%s183] sm:$0xff]
    %v185 = vld [vmem:[%s183 + $0x8] sm:$0xff]
    %v186 = vld [vmem:[%s183 + $0x10] sm:$0xff]
    %v187 = vld [vmem:[%s183 + $0x18] sm:$0xff]
    %v188 = vld [vmem:[%s183 + $0x20] sm:$0xff]
    %v189 = vld [vmem:[%s183 + $0x28] sm:$0xff]
    %v190 = vld [vmem:[%s183 + $0x30] sm:$0xff]
    %v191 = vld [vmem:[%s183 + $0x38] sm:$0xff]
    %v192 = vld [vmem:[%s183 + $0x40] sm:$0xff]
    %v193 = vld [vmem:[%s183 + $0x48] sm:$0xff]
    %v194 = vld [vmem:[%s183 + $0x50] sm:$0xff]
    %v195 = vld [vmem:[%s183 + $0x58] sm:$0xff]
    %v196 = vld [vmem:[%s183 + $0x60] sm:$0xff]
    %v197 = vld [vmem:[%s183 + $0x68] sm:$0xff]
    %v198 = vld [vmem:[%s183 + $0x70] sm:$0xff]
    %v199 = vld [vmem:[%s183 + $0x78] sm:$0xff]
    %200 = vmatprep.subr.mxu0 0.0
    %201 = vmatpush1.msra.mxu0 %v184
    %202 = vmatprep.subr.mxu0 0.0
    %203 = vmatpush1.msra.mxu0 %v185
    %204 = vmatprep.subr.mxu0 0.0
    %205 = vmatpush1.msra.mxu0 %v186
    %206 = vmatprep.subr.mxu0 0.0
    %207 = vmatpush1.msra.mxu0 %v187
    %208 = vmatprep.subr.mxu0 0.0
    %209 = vmatpush1.msra.mxu0 %v188
    %210 = vmatprep.subr.mxu0 0.0
    %211 = vmatpush1.msra.mxu0 %v189
    %212 = vmatprep.subr.mxu0 0.0
    %213 = vmatpush1.msra.mxu0 %v190
    %214 = vmatprep.subr.mxu0 0.0
    %215 = vmatpush1.msra.mxu0 %v191
    %216 = vmatprep.subr.mxu0 0.0
    %217 = vmatpush1.msra.mxu0 %v192
    %218 = vmatprep.subr.mxu0 0.0
    %219 = vmatpush1.msra.mxu0 %v193
    %220 = vmatprep.subr.mxu0 0.0
    %221 = vmatpush1.msra.mxu0 %v194
    %222 = vmatprep.subr.mxu0 0.0
    %223 = vmatpush1.msra.mxu0 %v195
    %224 = vmatprep.subr.mxu0 0.0
    %225 = vmatpush1.msra.mxu0 %v196
    %226 = vmatprep.subr.mxu0 0.0
    %227 = vmatpush1.msra.mxu0 %v197
    %228 = vmatprep.subr.mxu0 0.0
    %229 = vmatpush1.msra.mxu0 %v198
    %230 = vmatprep.subr.mxu0 0.0
    %231 = vmatpush1.msra.mxu0 %v199
    %232 = vmatprep.subr.mxu0 0.0
    %233 = vmatpush1.msra.mxu0 0.0
    %234 = vmatprep.subr.mxu0 0.0
    %235 = vmatpush1.msra.mxu0 0.0
    %236 = vmatprep.subr.mxu0 0.0
    %237 = vmatpush1.msra.mxu0 0.0
    %238 = vmatprep.subr.mxu0 0.0
    %239 = vmatpush1.msra.mxu0 0.0
    %240 = vmatprep.subr.mxu0 0.0
    %241 = vmatpush1.msra.mxu0 0.0
    %242 = vmatprep.subr.mxu0 0.0
    %243 = vmatpush1.msra.mxu0 0.0
    %244 = vmatprep.subr.mxu0 0.0
    %245 = vmatpush1.msra.mxu0 0.0
    %246 = vmatprep.subr.mxu0 0.0
    %247 = vmatpush1.msra.mxu0 0.0
    %248 = vmatprep.subr.mxu0 0.0
    %249 = vmatpush1.msra.mxu0 0.0
    %250 = vmatprep.subr.mxu0 0.0
    %251 = vmatpush1.msra.mxu0 0.0
    %252 = vmatprep.subr.mxu0 0.0
    %253 = vmatpush1.msra.mxu0 0.0
    %254 = vmatprep.subr.mxu0 0.0
    %255 = vmatpush1.msra.mxu0 0.0
    %256 = vmatprep.subr.mxu0 0.0
    %257 = vmatpush1.msra.mxu0 0.0
    %258 = vmatprep.subr.mxu0 0.0
    %259 = vmatpush1.msra.mxu0 0.0
    %260 = vmatprep.subr.mxu0 0.0
    %261 = vmatpush1.msra.mxu0 0.0
    %262 = vmatprep.subr.mxu0 0.0
    %263 = vmatpush1.msra.mxu0 0.0
    %264 = vmatprep.mubr.f32.mxu0 0.0
    %265 = vmatmul.mubr.f32.gmra.mrb[0].mxu0 %v138
    %v266 = vpop.f32.mrb[0].mxu0
    %v267 = vadd.f32 0.0, %v266
    %v268 = vpop.f32.mrb[0].mxu0
    %269 = vmatprep.mubr.f32.mxu0 0.0
    %270 = vmatmul.mubr.f32.gmra.mrb[0].mxu0 %v139
    %v271 = vpop.f32.mrb[0].mxu0
    %v272 = vadd.f32 0.0, %v271
    %v273 = vpop.f32.mrb[0].mxu0
    %274 = vmatprep.mubr.f32.mxu0 0.0
    %275 = vmatmul.mubr.f32.gmra.mrb[0].mxu0 %v140
    %v276 = vpop.f32.mrb[0].mxu0
    %v277 = vadd.f32 0.0, %v276
    %v278 = vpop.f32.mrb[0].mxu0
    %279 = vmatprep.mubr.f32.mxu0 0.0
    %280 = vmatmul.mubr.f32.gmra.mrb[0].mxu0 %v141
    %v281 = vpop.f32.mrb[0].mxu0
    %v282 = vadd.f32 0.0, %v281
    %v283 = vpop.f32.mrb[0].mxu0
    %284 = vdwg.mxu0
    %285 = vmatprep.subr.mxu0 0.0
    %286 = vmatpush1.msra.mxu0 %v167
    %287 = vmatprep.subr.mxu0 0.0
    %288 = vmatpush1.msra.mxu0 %v168
    %289 = vmatprep.subr.mxu0 0.0
    %290 = vmatpush1.msra.mxu0 %v169
    %291 = vmatprep.subr.mxu0 0.0
    %292 = vmatpush1.msra.mxu0 %v170
    %293 = vmatprep.subr.mxu0 0.0
    %294 = vmatpush1.msra.mxu0 %v171
    %295 = vmatprep.subr.mxu0 0.0
    %296 = vmatpush1.msra.mxu0 %v172
    %297 = vmatprep.subr.mxu0 0.0
    %298 = vmatpush1.msra.mxu0 %v173
    %299 = vmatprep.subr.mxu0 0.0
    %300 = vmatpush1.msra.mxu0 %v174
    %301 = vmatprep.subr.mxu0 0.0
    %302 = vmatpush1.msra.mxu0 %v175
    %303 = vmatprep.subr.mxu0 0.0
    %304 = vmatpush1.msra.mxu0 %v176
    %305 = vmatprep.subr.mxu0 0.0
    %306 = vmatpush1.msra.mxu0 %v177
    %307 = vmatprep.subr.mxu0 0.0
    %308 = vmatpush1.msra.mxu0 %v178
    %309 = vmatprep.subr.mxu0 0.0
    %310 = vmatpush1.msra.mxu0 %v179
    %311 = vmatprep.subr.mxu0 0.0
    %312 = vmatpush1.msra.mxu0 %v180
    %313 = vmatprep.subr.mxu0 0.0
    %314 = vmatpush1.msra.mxu0 %v181
    %315 = vmatprep.subr.mxu0 0.0
    %316 = vmatpush1.msra.mxu0 %v182
    %317 = vmatprep.subr.mxu0 0.0
    %318 = vmatpush1.msra.mxu0 0.0
    %319 = vmatprep.subr.mxu0 0.0
    %320 = vmatpush1.msra.mxu0 0.0
    %321 = vmatprep.subr.mxu0 0.0
    %322 = vmatpush1.msra.mxu0 0.0
    %323 = vmatprep.subr.mxu0 0.0
    %324 = vmatpush1.msra.mxu0 0.0
    %325 = vmatprep.subr.mxu0 0.0
    %326 = vmatpush1.msra.mxu0 0.0
    %327 = vmatprep.subr.mxu0 0.0
    %328 = vmatpush1.msra.mxu0 0.0
    %329 = vmatprep.subr.mxu0 0.0
    %330 = vmatpush1.msra.mxu0 0.0
    %331 = vmatprep.subr.mxu0 0.0
    %332 = vmatpush1.msra.mxu0 0.0
    %333 = vmatprep.subr.mxu0 0.0
    %334 = vmatpush1.msra.mxu0 0.0
    %335 = vmatprep.subr.mxu0 0.0
    %336 = vmatpush1.msra.mxu0 0.0
    %337 = vmatprep.subr.mxu0 0.0
    %338 = vmatpush1.msra.mxu0 0.0
    %339 = vmatprep.subr.mxu0 0.0
    %340 = vmatpush1.msra.mxu0 0.0
    %341 = vmatprep.subr.mxu0 0.0
    %342 = vmatpush1.msra.mxu0 0.0
    %343 = vmatprep.subr.mxu0 0.0
    %344 = vmatpush1.msra.mxu0 0.0
    %345 = vmatprep.subr.mxu0 0.0
    %346 = vmatpush1.msra.mxu0 0.0
    %347 = vmatprep.subr.mxu0 0.0
    %348 = vmatpush1.msra.mxu0 0.0
    %349 = vmatprep.mubr.f32.mxu0 0.0
    %350 = vmatmul.mubr.f32.gmra.mrb[0].mxu0 %v163
    %v351 = vpop.f32.mrb[0].mxu0
    %v352 = vadd.f32 %v267, %v351
    %v353 = vpop.f32.mrb[0].mxu0
    %354 = vmatprep.mubr.f32.mxu0 0.0
    %355 = vmatmul.mubr.f32.gmra.mrb[0].mxu0 %v164
    %v356 = vpop.f32.mrb[0].mxu0
    %v357 = vadd.f32 %v272, %v356
    %v358 = vpop.f32.mrb[0].mxu0
    %359 = vmatprep.mubr.f32.mxu0 0.0
    %360 = vmatmul.mubr.f32.gmra.mrb[0].mxu0 %v165
    %v361 = vpop.f32.mrb[0].mxu0
    %v362 = vadd.f32 %v277, %v361
    %v363 = vpop.f32.mrb[0].mxu0
    %364 = vmatprep.mubr.f32.mxu0 0.0
    %365 = vmatmul.mubr.f32.gmra.mrb[0].mxu0 %v166
    %v366 = vpop.f32.mrb[0].mxu0
    %v367 = vadd.f32 %v282, %v366
    %v368 = vpop.f32.mrb[0].mxu0
    %369 = vdwg.mxu0
    %vm370 = vcmask 1046528
    %v371 = vrot.slane %v138, 1
    %v372 = vrot.slane %v139, 1
    %v373 = vsel %vm370, %v371, %v372
    %v374 = vrot.slane %v140, 1
    %v375 = vsel %vm370, %v372, %v374
    %v376 = vrot.slane %v141, 1
    %v377 = vsel %vm370, %v374, %v376
    %v382 = vsel %vm370, %v376, 0.0
    %vm383 = vcmp.lt.s32.totalorder %v134, 15
    %vm384 = vcmp.lt.s32.totalorder %v135, 15
    %vm385 = vcmp.lt.s32.totalorder %v136, 15
    %vm386 = vcmp.lt.s32.totalorder %v137, 15
    %v387 = vsel %vm383, %v373, 0.0
    %v388 = vsel %vm384, %v375, 0.0
    %v389 = vsel %vm385, %v377, 0.0
    %v390 = vsel %vm386, %v382, 0.0
    %s391 = scalar_lea.vmem [#allocation5], 256
    %v392 = vld [vmem:[%s391] sm:$0xff]
    %v393 = vld [vmem:[%s391 + $0x8] sm:$0xff]
    %v394 = vld [vmem:[%s391 + $0x10] sm:$0xff]
    %v395 = vld [vmem:[%s391 + $0x18] sm:$0xff]
    %v396 = vld [vmem:[%s391 + $0x20] sm:$0xff]
    %v397 = vld [vmem:[%s391 + $0x28] sm:$0xff]
    %v398 = vld [vmem:[%s391 + $0x30] sm:$0xff]
    %v399 = vld [vmem:[%s391 + $0x38] sm:$0xff]
    %v400 = vld [vmem:[%s391 + $0x40] sm:$0xff]
    %v401 = vld [vmem:[%s391 + $0x48] sm:$0xff]
    %v402 = vld [vmem:[%s391 + $0x50] sm:$0xff]
    %v403 = vld [vmem:[%s391 + $0x58] sm:$0xff]
    %v404 = vld [vmem:[%s391 + $0x60] sm:$0xff]
    %v405 = vld [vmem:[%s391 + $0x68] sm:$0xff]
    %v406 = vld [vmem:[%s391 + $0x70] sm:$0xff]
    %v407 = vld [vmem:[%s391 + $0x78] sm:$0xff]
    %408 = vmatprep.subr.mxu0 0.0
    %409 = vmatpush1.msra.mxu0 %v392
    %410 = vmatprep.subr.mxu0 0.0
    %411 = vmatpush1.msra.mxu0 %v393
    %412 = vmatprep.subr.mxu0 0.0
    %413 = vmatpush1.msra.mxu0 %v394
    %414 = vmatprep.subr.mxu0 0.0
    %415 = vmatpush1.msra.mxu0 %v395
    %416 = vmatprep.subr.mxu0 0.0
    %417 = vmatpush1.msra.mxu0 %v396
    %418 = vmatprep.subr.mxu0 0.0
    %419 = vmatpush1.msra.mxu0 %v397
    %420 = vmatprep.subr.mxu0 0.0
    %421 = vmatpush1.msra.mxu0 %v398
    %422 = vmatprep.subr.mxu0 0.0
    %423 = vmatpush1.msra.mxu0 %v399
    %424 = vmatprep.subr.mxu0 0.0
    %425 = vmatpush1.msra.mxu0 %v400
    %426 = vmatprep.subr.mxu0 0.0
    %427 = vmatpush1.msra.mxu0 %v401
    %428 = vmatprep.subr.mxu0 0.0
    %429 = vmatpush1.msra.mxu0 %v402
    %430 = vmatprep.subr.mxu0 0.0
    %431 = vmatpush1.msra.mxu0 %v403
    %432 = vmatprep.subr.mxu0 0.0
    %433 = vmatpush1.msra.mxu0 %v404
    %434 = vmatprep.subr.mxu0 0.0
    %435 = vmatpush1.msra.mxu0 %v405
    %436 = vmatprep.subr.mxu0 0.0
    %437 = vmatpush1.msra.mxu0 %v406
    %438 = vmatprep.subr.mxu0 0.0
    %439 = vmatpush1.msra.mxu0 %v407
    %440 = vmatprep.subr.mxu0 0.0
    %441 = vmatpush1.msra.mxu0 0.0
    %442 = vmatprep.subr.mxu0 0.0
    %443 = vmatpush1.msra.mxu0 0.0
    %444 = vmatprep.subr.mxu0 0.0
    %445 = vmatpush1.msra.mxu0 0.0
    %446 = vmatprep.subr.mxu0 0.0
    %447 = vmatpush1.msra.mxu0 0.0
    %448 = vmatprep.subr.mxu0 0.0
    %449 = vmatpush1.msra.mxu0 0.0
    %450 = vmatprep.subr.mxu0 0.0
    %451 = vmatpush1.msra.mxu0 0.0
    %452 = vmatprep.subr.mxu0 0.0
    %453 = vmatpush1.msra.mxu0 0.0
    %454 = vmatprep.subr.mxu0 0.0
    %455 = vmatpush1.msra.mxu0 0.0
    %456 = vmatprep.subr.mxu0 0.0
    %457 = vmatpush1.msra.mxu0 0.0
    %458 = vmatprep.subr.mxu0 0.0
    %459 = vmatpush1.msra.mxu0 0.0
    %460 = vmatprep.subr.mxu0 0.0
    %461 = vmatpush1.msra.mxu0 0.0
    %462 = vmatprep.subr.mxu0 0.0
    %463 = vmatpush1.msra.mxu0 0.0
    %464 = vmatprep.subr.mxu0 0.0
    %465 = vmatpush1.msra.mxu0 0.0
    %466 = vmatprep.subr.mxu0 0.0
    %467 = vmatpush1.msra.mxu0 0.0
    %468 = vmatprep.subr.mxu0 0.0
    %469 = vmatpush1.msra.mxu0 0.0
    %470 = vmatprep.subr.mxu0 0.0
    %471 = vmatpush1.msra.mxu0 0.0
    %472 = vmatprep.mubr.f32.mxu0 0.0
    %473 = vmatmul.mubr.f32.gmra.mrb[0].mxu0 %v387
    %v474 = vpop.f32.mrb[0].mxu0
    %v475 = vadd.f32 0.0, %v474
    %v476 = vpop.f32.mrb[0].mxu0
    %477 = vmatprep.mubr.f32.mxu0 0.0
    %478 = vmatmul.mubr.f32.gmra.mrb[0].mxu0 %v388
    %v479 = vpop.f32.mrb[0].mxu0
    %v480 = vadd.f32 0.0, %v479
    %v481 = vpop.f32.mrb[0].mxu0
    %482 = vmatprep.mubr.f32.mxu0 0.0
    %483 = vmatmul.mubr.f32.gmra.mrb[0].mxu0 %v389
    %v484 = vpop.f32.mrb[0].mxu0
    %v485 = vadd.f32 0.0, %v484
    %v486 = vpop.f32.mrb[0].mxu0
    %487 = vmatprep.mubr.f32.mxu0 0.0
    %488 = vmatmul.mubr.f32.gmra.mrb[0].mxu0 %v390
    %v489 = vpop.f32.mrb[0].mxu0
    %v490 = vadd.f32 0.0, %v489
    %v491 = vpop.f32.mrb[0].mxu0
    %492 = vdwg.mxu0
    %v493 = vadd.f32 %v352, %v475
    %v494 = vadd.f32 %v357, %v480
    %v495 = vadd.f32 %v362, %v485
    %v496 = vadd.f32 %v367, %v490
    %v497 = vld [vmem:[%s4] sm:$0x1]
    %v498 = vld [vmem:[%s5] sm:$0x1]
    %v499 = vadd.f32 %v493, %v494
    %v500 = vadd.f32 %v499, %v495
    %v501 = vadd.f32 %v500, %v496
    %v502 = vrot.slane %v501, 4
    %v503 = vadd.f32 %v501, %v502
    %v504 = vrot.slane %v503, 2
    %v505 = vadd.f32 %v503, %v504
    %v506 = vrot.slane %v505, 1
    %v507 = vadd.f32 %v505, %v506
    %v508 = vmul.f32 %v493, %v493
    %v509 = vmul.f32 %v494, %v494
    %v510 = vmul.f32 %v495, %v495
    %v511 = vmul.f32 %v496, %v496
    %v512 = vadd.f32 %v508, %v509
    %v513 = vadd.f32 %v512, %v510
    %v514 = vadd.f32 %v513, %v511
    %v515 = vrot.slane %v514, 4
    %v516 = vadd.f32 %v514, %v515
    %v517 = vrot.slane %v516, 2
    %v518 = vadd.f32 %v516, %v517
    %v519 = vrot.slane %v518, 1
    %v520 = vadd.f32 %v518, %v519
    %v521 = vsel %vm146, %v507, %v520
    %v522 = vld [vmem:[#allocation8] sm:$0xff]
    %v523 = vld [vmem:[#allocation8 + $0x8] sm:$0xff]
    %v524 = vld [vmem:[#allocation8 + $0x10] sm:$0xff]
    %v525 = vld [vmem:[#allocation8 + $0x18] sm:$0xff]
    %v526 = vld [vmem:[#allocation8 + $0x20] sm:$0xff]
    %v527 = vld [vmem:[#allocation8 + $0x28] sm:$0xff]
    %v528 = vld [vmem:[#allocation8 + $0x30] sm:$0xff]
    %v529 = vld [vmem:[#allocation8 + $0x38] sm:$0xff]
    %v530 = vld [vmem:[#allocation8 + $0x40] sm:$0xff]
    %v531 = vld [vmem:[#allocation8 + $0x48] sm:$0xff]
    %v532 = vld [vmem:[#allocation8 + $0x50] sm:$0xff]
    %v533 = vld [vmem:[#allocation8 + $0x58] sm:$0xff]
    %v534 = vld [vmem:[#allocation8 + $0x60] sm:$0xff]
    %v535 = vld [vmem:[#allocation8 + $0x68] sm:$0xff]
    %v536 = vld [vmem:[#allocation8 + $0x70] sm:$0xff]
    %v537 = vld [vmem:[#allocation8 + $0x78] sm:$0xff]
    %538 = vmatprep.subr.mxu0 0.0
    %539 = vmatpush1.msra.mxu0 %v522
    %540 = vmatprep.subr.mxu0 0.0
    %541 = vmatpush1.msra.mxu0 %v523
    %542 = vmatprep.subr.mxu0 0.0
    %543 = vmatpush1.msra.mxu0 %v524
    %544 = vmatprep.subr.mxu0 0.0
    %545 = vmatpush1.msra.mxu0 %v525
    %546 = vmatprep.subr.mxu0 0.0
    %547 = vmatpush1.msra.mxu0 %v526
    %548 = vmatprep.subr.mxu0 0.0
    %549 = vmatpush1.msra.mxu0 %v527
    %550 = vmatprep.subr.mxu0 0.0
    %551 = vmatpush1.msra.mxu0 %v528
    %552 = vmatprep.subr.mxu0 0.0
    %553 = vmatpush1.msra.mxu0 %v529
    %554 = vmatprep.subr.mxu0 0.0
    %555 = vmatpush1.msra.mxu0 %v530
    %556 = vmatprep.subr.mxu0 0.0
    %557 = vmatpush1.msra.mxu0 %v531
    %558 = vmatprep.subr.mxu0 0.0
    %559 = vmatpush1.msra.mxu0 %v532
    %560 = vmatprep.subr.mxu0 0.0
    %561 = vmatpush1.msra.mxu0 %v533
    %562 = vmatprep.subr.mxu0 0.0
    %563 = vmatpush1.msra.mxu0 %v534
    %564 = vmatprep.subr.mxu0 0.0
    %565 = vmatpush1.msra.mxu0 %v535
    %566 = vmatprep.subr.mxu0 0.0
    %567 = vmatpush1.msra.mxu0 %v536
    %568 = vmatprep.subr.mxu0 0.0
    %569 = vmatpush1.msra.mxu0 %v537
    %570 = vmatprep.subr.mxu0 0.0
    %571 = vmatpush1.msra.mxu0 0.0
    %572 = vmatprep.subr.mxu0 0.0
    %573 = vmatpush1.msra.mxu0 0.0
    %574 = vmatprep.subr.mxu0 0.0
    %575 = vmatpush1.msra.mxu0 0.0
    %576 = vmatprep.subr.mxu0 0.0
    %577 = vmatpush1.msra.mxu0 0.0
    %578 = vmatprep.subr.mxu0 0.0
    %579 = vmatpush1.msra.mxu0 0.0
    %580 = vmatprep.subr.mxu0 0.0
    %581 = vmatpush1.msra.mxu0 0.0
    %582 = vmatprep.subr.mxu0 0.0
    %583 = vmatpush1.msra.mxu0 0.0
    %584 = vmatprep.subr.mxu0 0.0
    %585 = vmatpush1.msra.mxu0 0.0
    %586 = vmatprep.subr.mxu0 0.0
    %587 = vmatpush1.msra.mxu0 0.0
    %588 = vmatprep.subr.mxu0 0.0
    %589 = vmatpush1.msra.mxu0 0.0
    %590 = vmatprep.subr.mxu0 0.0
    %591 = vmatpush1.msra.mxu0 0.0
    %592 = vmatprep.subr.mxu0 0.0
    %593 = vmatpush1.msra.mxu0 0.0
    %594 = vmatprep.subr.mxu0 0.0
    %595 = vmatpush1.msra.mxu0 0.0
    %596 = vmatprep.subr.mxu0 0.0
    %597 = vmatpush1.msra.mxu0 0.0
    %598 = vmatprep.subr.mxu0 0.0
    %599 = vmatpush1.msra.mxu0 0.0
    %600 = vmatprep.subr.mxu0 0.0
    %601 = vmatpush1.msra.mxu0 0.0
    %602 = vmatprep.mubr.f32.mxu0 0.0
    %603 = vmatmul.mubr.f32.gmra.mrb[0].mxu0 %v521
    %v604 = vpop.f32.mrb[0].mxu0
    %v605 = vadd.f32 0.0, %v604
    %v606 = vpop.f32.mrb[0].mxu0
    %607 = vdwg.mxu0
    %v608 = vmul.f32 %v605, 0.001953125
    %v609 = vmul.f32 %v608, %v608
    %v611 = vrot.slane %v609, 7
    %v613 = vsub.f32 %v608, %v611
    %v614 = vadd.f32 %v613, 1e-05
    %v615 = vrsqrt.pop %v614
    %v618 = vunpack.c.l.s4 1966171168
    %v619 = vunpack.c.0.s8 %v618
    %v620 = vlaneseq
    %v621 = vshrl.u32 %v620, 7
    %v622 = vsub.s32 %v619, %v621
    %v623 = vrot.slane %v615, %v622
    %v624 = vcombine.high %v623, %v623
    %v626 = vunpack.c.l.s4 1966171168
    %v627 = vunpack.c.0.s8 %v626
    %v628 = vlaneseq
    %v629 = vshrl.u32 %v628, 7
    %v630 = vsub.s32 %v627, %v629
    %v631 = vrot.slane %v624, %v630
    %v633 = vmul.f32 %v497, %v631
    %v634 = vmul.f32 %v608, %v633
    %v635 = vsub.f32 %v498, %v634
    %v637 = vlaneseq
    %v638 = vshrl.u32 %v637, 7
    %v639 = vsub.s32 0, %v638
    %v640 = vrot.slane %v633, %v639
    %v642 = vmul.f32 %v493, %v640
    %v643 = vmul.f32 %v494, %v640
    %v644 = vmul.f32 %v495, %v640
    %v645 = vmul.f32 %v496, %v640
    %v647 = vlaneseq
    %v648 = vshrl.u32 %v647, 7
    %v649 = vsub.s32 0, %v648
    %v650 = vrot.slane %v635, %v649
    %v652 = vadd.f32 %v642, %v650
    %v653 = vadd.f32 %v643, %v650
    %v654 = vadd.f32 %v644, %v650
    %v655 = vadd.f32 %v645, %v650
    %v656 = vmax.f32 %v652, 0.0
    %v657 = vmax.f32 %v653, 0.0
    %v658 = vmax.f32 %v654, 0.0
    %v659 = vmax.f32 %v655, 0.0
    %v664 = vrot.slane %v656, 7
    %v665 = vrot.slane %v657, 7
    %v666 = vsel %vm146, %v664, %v665
    %v667 = vrot.slane %v658, 7
    %v668 = vsel %vm146, %v665, %v667
    %v669 = vrot.slane %v659, 7
    %v670 = vsel %vm146, %v667, %v669
    %v675 = vsel %vm146, 0.0, %v664
    %v676 = vsel %vm159, %v675, 0.0
    %v677 = vsel %vm160, %v666, 0.0
    %v678 = vsel %vm161, %v668, 0.0
    %v679 = vsel %vm162, %v670, 0.0
    %v680 = vld [vmem:[#allocation7] sm:$0xff]
    %v681 = vld [vmem:[#allocation7 + $0x8] sm:$0xff]
    %v682 = vld [vmem:[#allocation7 + $0x10] sm:$0xff]
    %v683 = vld [vmem:[#allocation7 + $0x18] sm:$0xff]
    %v684 = vld [vmem:[#allocation7 + $0x20] sm:$0xff]
    %v685 = vld [vmem:[#allocation7 + $0x28] sm:$0xff]
    %v686 = vld [vmem:[#allocation7 + $0x30] sm:$0xff]
    %v687 = vld [vmem:[#allocation7 + $0x38] sm:$0xff]
    %v688 = vld [vmem:[#allocation7 + $0x40] sm:$0xff]
    %v689 = vld [vmem:[#allocation7 + $0x48] sm:$0xff]
    %v690 = vld [vmem:[#allocation7 + $0x50] sm:$0xff]
    %v691 = vld [vmem:[#allocation7 + $0x58] sm:$0xff]
    %v692 = vld [vmem:[#allocation7 + $0x60] sm:$0xff]
    %v693 = vld [vmem:[#allocation7 + $0x68] sm:$0xff]
    %v694 = vld [vmem:[#allocation7 + $0x70] sm:$0xff]
    %v695 = vld [vmem:[#allocation7 + $0x78] sm:$0xff]
    %s696 = scalar_lea.vmem [#allocation7], 128
    %v697 = vld [vmem:[%s696] sm:$0xff]
    %v698 = vld [vmem:[%s696 + $0x8] sm:$0xff]
    %v699 = vld [vmem:[%s696 + $0x10] sm:$0xff]
    %v700 = vld [vmem:[%s696 + $0x18] sm:$0xff]
    %v701 = vld [vmem:[%s696 + $0x20] sm:$0xff]
    %v702 = vld [vmem:[%s696 + $0x28] sm:$0xff]
    %v703 = vld [vmem:[%s696 + $0x30] sm:$0xff]
    %v704 = vld [vmem:[%s696 + $0x38] sm:$0xff]
    %v705 = vld [vmem:[%s696 + $0x40] sm:$0xff]
    %v706 = vld [vmem:[%s696 + $0x48] sm:$0xff]
    %v707 = vld [vmem:[%s696 + $0x50] sm:$0xff]
    %v708 = vld [vmem:[%s696 + $0x58] sm:$0xff]
    %v709 = vld [vmem:[%s696 + $0x60] sm:$0xff]
    %v710 = vld [vmem:[%s696 + $0x68] sm:$0xff]
    %v711 = vld [vmem:[%s696 + $0x70] sm:$0xff]
    %v712 = vld [vmem:[%s696 + $0x78] sm:$0xff]
    %713 = vmatprep.subr.mxu0 0.0
    %714 = vmatpush1.msra.mxu0 %v697
    %715 = vmatprep.subr.mxu0 0.0
    %716 = vmatpush1.msra.mxu0 %v698
    %717 = vmatprep.subr.mxu0 0.0
    %718 = vmatpush1.msra.mxu0 %v699
    %719 = vmatprep.subr.mxu0 0.0
    %720 = vmatpush1.msra.mxu0 %v700
    %721 = vmatprep.subr.mxu0 0.0
    %722 = vmatpush1.msra.mxu0 %v701
    %723 = vmatprep.subr.mxu0 0.0
    %724 = vmatpush1.msra.mxu0 %v702
    %725 = vmatprep.subr.mxu0 0.0
    %726 = vmatpush1.msra.mxu0 %v703
    %727 = vmatprep.subr.mxu0 0.0
    %728 = vmatpush1.msra.mxu0 %v704
    %729 = vmatprep.subr.mxu0 0.0
    %730 = vmatpush1.msra.mxu0 %v705
    %731 = vmatprep.subr.mxu0 0.0
    %732 = vmatpush1.msra.mxu0 %v706
    %733 = vmatprep.subr.mxu0 0.0
    %734 = vmatpush1.msra.mxu0 %v707
    %735 = vmatprep.subr.mxu0 0.0
    %736 = vmatpush1.msra.mxu0 %v708
    %737 = vmatprep.subr.mxu0 0.0
    %738 = vmatpush1.msra.mxu0 %v709
    %739 = vmatprep.subr.mxu0 0.0
    %740 = vmatpush1.msra.mxu0 %v710
    %741 = vmatprep.subr.mxu0 0.0
    %742 = vmatpush1.msra.mxu0 %v711
    %743 = vmatprep.subr.mxu0 0.0
    %744 = vmatpush1.msra.mxu0 %v712
    %745 = vmatprep.subr.mxu0 0.0
    %746 = vmatpush1.msra.mxu0 0.0
    %747 = vmatprep.subr.mxu0 0.0
    %748 = vmatpush1.msra.mxu0 0.0
    %749 = vmatprep.subr.mxu0 0.0
    %750 = vmatpush1.msra.mxu0 0.0
    %751 = vmatprep.subr.mxu0 0.0
    %752 = vmatpush1.msra.mxu0 0.0
    %753 = vmatprep.subr.mxu0 0.0
    %754 = vmatpush1.msra.mxu0 0.0
    %755 = vmatprep.subr.mxu0 0.0
    %756 = vmatpush1.msra.mxu0 0.0
    %757 = vmatprep.subr.mxu0 0.0
    %758 = vmatpush1.msra.mxu0 0.0
    %759 = vmatprep.subr.mxu0 0.0
    %760 = vmatpush1.msra.mxu0 0.0
    %761 = vmatprep.subr.mxu0 0.0
    %762 = vmatpush1.msra.mxu0 0.0
    %763 = vmatprep.subr.mxu0 0.0
    %764 = vmatpush1.msra.mxu0 0.0
    %765 = vmatprep.subr.mxu0 0.0
    %766 = vmatpush1.msra.mxu0 0.0
    %767 = vmatprep.subr.mxu0 0.0
    %768 = vmatpush1.msra.mxu0 0.0
    %769 = vmatprep.subr.mxu0 0.0
    %770 = vmatpush1.msra.mxu0 0.0
    %771 = vmatprep.subr.mxu0 0.0
    %772 = vmatpush1.msra.mxu0 0.0
    %773 = vmatprep.subr.mxu0 0.0
    %774 = vmatpush1.msra.mxu0 0.0
    %775 = vmatprep.subr.mxu0 0.0
    %776 = vmatpush1.msra.mxu0 0.0
    %777 = vmatprep.mubr.f32.mxu0 0.0
    %778 = vmatmul.mubr.f32.gmra.mrb[0].mxu0 %v656
    %v779 = vpop.f32.mrb[0].mxu0
    %v780 = vadd.f32 0.0, %v779
    %v781 = vpop.f32.mrb[0].mxu0
    %782 = vmatprep.mubr.f32.mxu0 0.0
    %783 = vmatmul.mubr.f32.gmra.mrb[0].mxu0 %v657
    %v784 = vpop.f32.mrb[0].mxu0
    %v785 = vadd.f32 0.0, %v784
    %v786 = vpop.f32.mrb[0].mxu0
    %787 = vmatprep.mubr.f32.mxu0 0.0
    %788 = vmatmul.mubr.f32.gmra.mrb[0].mxu0 %v658
    %v789 = vpop.f32.mrb[0].mxu0
    %v790 = vadd.f32 0.0, %v789
    %v791 = vpop.f32.mrb[0].mxu0
    %792 = vmatprep.mubr.f32.mxu0 0.0
    %793 = vmatmul.mubr.f32.gmra.mrb[0].mxu0 %v659
    %v794 = vpop.f32.mrb[0].mxu0
    %v795 = vadd.f32 0.0, %v794
    %v796 = vpop.f32.mrb[0].mxu0
    %797 = vdwg.mxu0
    %798 = vmatprep.subr.mxu0 0.0
    %799 = vmatpush1.msra.mxu0 %v680
    %800 = vmatprep.subr.mxu0 0.0
    %801 = vmatpush1.msra.mxu0 %v681
    %802 = vmatprep.subr.mxu0 0.0
    %803 = vmatpush1.msra.mxu0 %v682
    %804 = vmatprep.subr.mxu0 0.0
    %805 = vmatpush1.msra.mxu0 %v683
    %806 = vmatprep.subr.mxu0 0.0
    %807 = vmatpush1.msra.mxu0 %v684
    %808 = vmatprep.subr.mxu0 0.0
    %809 = vmatpush1.msra.mxu0 %v685
    %810 = vmatprep.subr.mxu0 0.0
    %811 = vmatpush1.msra.mxu0 %v686
    %812 = vmatprep.subr.mxu0 0.0
    %813 = vmatpush1.msra.mxu0 %v687
    %814 = vmatprep.subr.mxu0 0.0
    %815 = vmatpush1.msra.mxu0 %v688
    %816 = vmatprep.subr.mxu0 0.0
    %817 = vmatpush1.msra.mxu0 %v689
    %818 = vmatprep.subr.mxu0 0.0
    %819 = vmatpush1.msra.mxu0 %v690
    %820 = vmatprep.subr.mxu0 0.0
    %821 = vmatpush1.msra.mxu0 %v691
    %822 = vmatprep.subr.mxu0 0.0
    %823 = vmatpush1.msra.mxu0 %v692
    %824 = vmatprep.subr.mxu0 0.0
    %825 = vmatpush1.msra.mxu0 %v693
    %826 = vmatprep.subr.mxu0 0.0
    %827 = vmatpush1.msra.mxu0 %v694
    %828 = vmatprep.subr.mxu0 0.0
    %829 = vmatpush1.msra.mxu0 %v695
    %830 = vmatprep.subr.mxu0 0.0
    %831 = vmatpush1.msra.mxu0 0.0
    %832 = vmatprep.subr.mxu0 0.0
    %833 = vmatpush1.msra.mxu0 0.0
    %834 = vmatprep.subr.mxu0 0.0
    %835 = vmatpush1.msra.mxu0 0.0
    %836 = vmatprep.subr.mxu0 0.0
    %837 = vmatpush1.msra.mxu0 0.0
    %838 = vmatprep.subr.mxu0 0.0
    %839 = vmatpush1.msra.mxu0 0.0
    %840 = vmatprep.subr.mxu0 0.0
    %841 = vmatpush1.msra.mxu0 0.0
    %842 = vmatprep.subr.mxu0 0.0
    %843 = vmatpush1.msra.mxu0 0.0
    %844 = vmatprep.subr.mxu0 0.0
    %845 = vmatpush1.msra.mxu0 0.0
    %846 = vmatprep.subr.mxu0 0.0
    %847 = vmatpush1.msra.mxu0 0.0
    %848 = vmatprep.subr.mxu0 0.0
    %849 = vmatpush1.msra.mxu0 0.0
    %850 = vmatprep.subr.mxu0 0.0
    %851 = vmatpush1.msra.mxu0 0.0
    %852 = vmatprep.subr.mxu0 0.0
    %853 = vmatpush1.msra.mxu0 0.0
    %854 = vmatprep.subr.mxu0 0.0
    %855 = vmatpush1.msra.mxu0 0.0
    %856 = vmatprep.subr.mxu0 0.0
    %857 = vmatpush1.msra.mxu0 0.0
    %858 = vmatprep.subr.mxu0 0.0
    %859 = vmatpush1.msra.mxu0 0.0
    %860 = vmatprep.subr.mxu0 0.0
    %861 = vmatpush1.msra.mxu0 0.0
    %862 = vmatprep.mubr.f32.mxu0 0.0
    %863 = vmatmul.mubr.f32.gmra.mrb[0].mxu0 %v676
    %v864 = vpop.f32.mrb[0].mxu0
    %v865 = vadd.f32 %v780, %v864
    %v866 = vpop.f32.mrb[0].mxu0
    %867 = vmatprep.mubr.f32.mxu0 0.0
    %868 = vmatmul.mubr.f32.gmra.mrb[0].mxu0 %v677
    %v869 = vpop.f32.mrb[0].mxu0
    %v870 = vadd.f32 %v785, %v869
    %v871 = vpop.f32.mrb[0].mxu0
    %872 = vmatprep.mubr.f32.mxu0 0.0
    %873 = vmatmul.mubr.f32.gmra.mrb[0].mxu0 %v678
    %v874 = vpop.f32.mrb[0].mxu0
    %v875 = vadd.f32 %v790, %v874
    %v876 = vpop.f32.mrb[0].mxu0
    %877 = vmatprep.mubr.f32.mxu0 0.0
    %878 = vmatmul.mubr.f32.gmra.mrb[0].mxu0 %v679
    %v879 = vpop.f32.mrb[0].mxu0
    %v880 = vadd.f32 %v795, %v879
    %v881 = vpop.f32.mrb[0].mxu0
    %882 = vdwg.mxu0
    %v883 = vrot.slane %v656, 1
    %v884 = vrot.slane %v657, 1
    %v885 = vsel %vm370, %v883, %v884
    %v886 = vrot.slane %v658, 1
    %v887 = vsel %vm370, %v884, %v886
    %v888 = vrot.slane %v659, 1
    %v889 = vsel %vm370, %v886, %v888
    %v894 = vsel %vm370, %v888, 0.0
    %v895 = vsel %vm383, %v885, 0.0
    %v896 = vsel %vm384, %v887, 0.0
    %v897 = vsel %vm385, %v889, 0.0
    %v898 = vsel %vm386, %v894, 0.0
    %s899 = scalar_lea.vmem [#allocation7], 256
    %v900 = vld [vmem:[%s899] sm:$0xff]
    %v901 = vld [vmem:[%s899 + $0x8] sm:$0xff]
    %v902 = vld [vmem:[%s899 + $0x10] sm:$0xff]
    %v903 = vld [vmem:[%s899 + $0x18] sm:$0xff]
    %v904 = vld [vmem:[%s899 + $0x20] sm:$0xff]
    %v905 = vld [vmem:[%s899 + $0x28] sm:$0xff]
    %v906 = vld [vmem:[%s899 + $0x30] sm:$0xff]
    %v907 = vld [vmem:[%s899 + $0x38] sm:$0xff]
    %v908 = vld [vmem:[%s899 + $0x40] sm:$0xff]
    %v909 = vld [vmem:[%s899 + $0x48] sm:$0xff]
    %v910 = vld [vmem:[%s899 + $0x50] sm:$0xff]
    %v911 = vld [vmem:[%s899 + $0x58] sm:$0xff]
    %v912 = vld [vmem:[%s899 + $0x60] sm:$0xff]
    %v913 = vld [vmem:[%s899 + $0x68] sm:$0xff]
    %v914 = vld [vmem:[%s899 + $0x70] sm:$0xff]
    %v915 = vld [vmem:[%s899 + $0x78] sm:$0xff]
    %916 = vmatprep.subr.mxu0 0.0
    %917 = vmatpush1.msra.mxu0 %v900
    %918 = vmatprep.subr.mxu0 0.0
    %919 = vmatpush1.msra.mxu0 %v901
    %920 = vmatprep.subr.mxu0 0.0
    %921 = vmatpush1.msra.mxu0 %v902
    %922 = vmatprep.subr.mxu0 0.0
    %923 = vmatpush1.msra.mxu0 %v903
    %924 = vmatprep.subr.mxu0 0.0
    %925 = vmatpush1.msra.mxu0 %v904
    %926 = vmatprep.subr.mxu0 0.0
    %927 = vmatpush1.msra.mxu0 %v905
    %928 = vmatprep.subr.mxu0 0.0
    %929 = vmatpush1.msra.mxu0 %v906
    %930 = vmatprep.subr.mxu0 0.0
    %931 = vmatpush1.msra.mxu0 %v907
    %932 = vmatprep.subr.mxu0 0.0
    %933 = vmatpush1.msra.mxu0 %v908
    %934 = vmatprep.subr.mxu0 0.0
    %935 = vmatpush1.msra.mxu0 %v909
    %936 = vmatprep.subr.mxu0 0.0
    %937 = vmatpush1.msra.mxu0 %v910
    %938 = vmatprep.subr.mxu0 0.0
    %939 = vmatpush1.msra.mxu0 %v911
    %940 = vmatprep.subr.mxu0 0.0
    %941 = vmatpush1.msra.mxu0 %v912
    %942 = vmatprep.subr.mxu0 0.0
    %943 = vmatpush1.msra.mxu0 %v913
    %944 = vmatprep.subr.mxu0 0.0
    %945 = vmatpush1.msra.mxu0 %v914
    %946 = vmatprep.subr.mxu0 0.0
    %947 = vmatpush1.msra.mxu0 %v915
    %948 = vmatprep.subr.mxu0 0.0
    %949 = vmatpush1.msra.mxu0 0.0
    %950 = vmatprep.subr.mxu0 0.0
    %951 = vmatpush1.msra.mxu0 0.0
    %952 = vmatprep.subr.mxu0 0.0
    %953 = vmatpush1.msra.mxu0 0.0
    %954 = vmatprep.subr.mxu0 0.0
    %955 = vmatpush1.msra.mxu0 0.0
    %956 = vmatprep.subr.mxu0 0.0
    %957 = vmatpush1.msra.mxu0 0.0
    %958 = vmatprep.subr.mxu0 0.0
    %959 = vmatpush1.msra.mxu0 0.0
    %960 = vmatprep.subr.mxu0 0.0
    %961 = vmatpush1.msra.mxu0 0.0
    %962 = vmatprep.subr.mxu0 0.0
    %963 = vmatpush1.msra.mxu0 0.0
    %964 = vmatprep.subr.mxu0 0.0
    %965 = vmatpush1.msra.mxu0 0.0
    %966 = vmatprep.subr.mxu0 0.0
    %967 = vmatpush1.msra.mxu0 0.0
    %968 = vmatprep.subr.mxu0 0.0
    %969 = vmatpush1.msra.mxu0 0.0
    %970 = vmatprep.subr.mxu0 0.0
    %971 = vmatpush1.msra.mxu0 0.0
    %972 = vmatprep.subr.mxu0 0.0
    %973 = vmatpush1.msra.mxu0 0.0
    %974 = vmatprep.subr.mxu0 0.0
    %975 = vmatpush1.msra.mxu0 0.0
    %976 = vmatprep.subr.mxu0 0.0
    %977 = vmatpush1.msra.mxu0 0.0
    %978 = vmatprep.subr.mxu0 0.0
    %979 = vmatpush1.msra.mxu0 0.0
    %980 = vmatprep.mubr.f32.mxu0 0.0
    %981 = vmatmul.mubr.f32.gmra.mrb[0].mxu0 %v895
    %v982 = vpop.f32.mrb[0].mxu0
    %v983 = vadd.f32 0.0, %v982
    %v984 = vpop.f32.mrb[0].mxu0
    %985 = vmatprep.mubr.f32.mxu0 0.0
    %986 = vmatmul.mubr.f32.gmra.mrb[0].mxu0 %v896
    %v987 = vpop.f32.mrb[0].mxu0
    %v988 = vadd.f32 0.0, %v987
    %v989 = vpop.f32.mrb[0].mxu0
    %990 = vmatprep.mubr.f32.mxu0 0.0
    %991 = vmatmul.mubr.f32.gmra.mrb[0].mxu0 %v897
    %v992 = vpop.f32.mrb[0].mxu0
    %v993 = vadd.f32 0.0, %v992
    %v994 = vpop.f32.mrb[0].mxu0
    %995 = vmatprep.mubr.f32.mxu0 0.0
    %996 = vmatmul.mubr.f32.gmra.mrb[0].mxu0 %v898
    %v997 = vpop.f32.mrb[0].mxu0
    %v998 = vadd.f32 0.0, %v997
    %v999 = vpop.f32.mrb[0].mxu0
    %1000 = vdwg.mxu0
    %v1001 = vadd.f32 %v865, %v983
    %v1002 = vadd.f32 %v870, %v988
    %v1003 = vadd.f32 %v875, %v993
    %v1004 = vadd.f32 %v880, %v998
    %v1005 = vld [vmem:[%s6] sm:$0x1]
    %v1006 = vld [vmem:[%s7] sm:$0x1]
    %v1007 = vadd.f32 %v1001, %v1002
    %v1008 = vadd.f32 %v1007, %v1003
    %v1009 = vadd.f32 %v1008, %v1004
    %v1010 = vrot.slane %v1009, 4
    %v1011 = vadd.f32 %v1009, %v1010
    %v1012 = vrot.slane %v1011, 2
    %v1013 = vadd.f32 %v1011, %v1012
    %v1014 = vrot.slane %v1013, 1
    %v1015 = vadd.f32 %v1013, %v1014
    %v1016 = vmul.f32 %v1001, %v1001
    %v1017 = vmul.f32 %v1002, %v1002
    %v1018 = vmul.f32 %v1003, %v1003
    %v1019 = vmul.f32 %v1004, %v1004
    %v1020 = vadd.f32 %v1016, %v1017
    %v1021 = vadd.f32 %v1020, %v1018
    %v1022 = vadd.f32 %v1021, %v1019
    %v1023 = vrot.slane %v1022, 4
    %v1024 = vadd.f32 %v1022, %v1023
    %v1025 = vrot.slane %v1024, 2
    %v1026 = vadd.f32 %v1024, %v1025
    %v1027 = vrot.slane %v1026, 1
    %v1028 = vadd.f32 %v1026, %v1027
    %v1029 = vsel %vm146, %v1015, %v1028
    %1030 = vmatprep.subr.mxu0 0.0
    %1031 = vmatpush1.msra.mxu0 %v522
    %1032 = vmatprep.subr.mxu0 0.0
    %1033 = vmatpush1.msra.mxu0 %v523
    %1034 = vmatprep.subr.mxu0 0.0
    %1035 = vmatpush1.msra.mxu0 %v524
    %1036 = vmatprep.subr.mxu0 0.0
    %1037 = vmatpush1.msra.mxu0 %v525
    %1038 = vmatprep.subr.mxu0 0.0
    %1039 = vmatpush1.msra.mxu0 %v526
    %1040 = vmatprep.subr.mxu0 0.0
    %1041 = vmatpush1.msra.mxu0 %v527
    %1042 = vmatprep.subr.mxu0 0.0
    %1043 = vmatpush1.msra.mxu0 %v528
    %1044 = vmatprep.subr.mxu0 0.0
    %1045 = vmatpush1.msra.mxu0 %v529
    %1046 = vmatprep.subr.mxu0 0.0
    %1047 = vmatpush1.msra.mxu0 %v530
    %1048 = vmatprep.subr.mxu0 0.0
    %1049 = vmatpush1.msra.mxu0 %v531
    %1050 = vmatprep.subr.mxu0 0.0
    %1051 = vmatpush1.msra.mxu0 %v532
    %1052 = vmatprep.subr.mxu0 0.0
    %1053 = vmatpush1.msra.mxu0 %v533
    %1054 = vmatprep.subr.mxu0 0.0
    %1055 = vmatpush1.msra.mxu0 %v534
    %1056 = vmatprep.subr.mxu0 0.0
    %1057 = vmatpush1.msra.mxu0 %v535
    %1058 = vmatprep.subr.mxu0 0.0
    %1059 = vmatpush1.msra.mxu0 %v536
    %1060 = vmatprep.subr.mxu0 0.0
    %1061 = vmatpush1.msra.mxu0 %v537
    %1062 = vmatprep.subr.mxu0 0.0
    %1063 = vmatpush1.msra.mxu0 0.0
    %1064 = vmatprep.subr.mxu0 0.0
    %1065 = vmatpush1.msra.mxu0 0.0
    %1066 = vmatprep.subr.mxu0 0.0
    %1067 = vmatpush1.msra.mxu0 0.0
    %1068 = vmatprep.subr.mxu0 0.0
    %1069 = vmatpush1.msra.mxu0 0.0
    %1070 = vmatprep.subr.mxu0 0.0
    %1071 = vmatpush1.msra.mxu0 0.0
    %1072 = vmatprep.subr.mxu0 0.0
    %1073 = vmatpush1.msra.mxu0 0.0
    %1074 = vmatprep.subr.mxu0 0.0
    %1075 = vmatpush1.msra.mxu0 0.0
    %1076 = vmatprep.subr.mxu0 0.0
    %1077 = vmatpush1.msra.mxu0 0.0
    %1078 = vmatprep.subr.mxu0 0.0
    %1079 = vmatpush1.msra.mxu0 0.0
    %1080 = vmatprep.subr.mxu0 0.0
    %1081 = vmatpush1.msra.mxu0 0.0
    %1082 = vmatprep.subr.mxu0 0.0
    %1083 = vmatpush1.msra.mxu0 0.0
    %1084 = vmatprep.subr.mxu0 0.0
    %1085 = vmatpush1.msra.mxu0 0.0
    %1086 = vmatprep.subr.mxu0 0.0
    %1087 = vmatpush1.msra.mxu0 0.0
    %1088 = vmatprep.subr.mxu0 0.0
    %1089 = vmatpush1.msra.mxu0 0.0
    %1090 = vmatprep.subr.mxu0 0.0
    %1091 = vmatpush1.msra.mxu0 0.0
    %1092 = vmatprep.subr.mxu0 0.0
    %1093 = vmatpush1.msra.mxu0 0.0
    %1094 = vmatprep.mubr.f32.mxu0 0.0
    %1095 = vmatmul.mubr.f32.gmra.mrb[0].mxu0 %v1029
    %v1096 = vpop.f32.mrb[0].mxu0
    %v1097 = vadd.f32 0.0, %v1096
    %v1098 = vpop.f32.mrb[0].mxu0
    %1099 = vdwg.mxu0
    %v1100 = vmul.f32 %v1097, 0.001953125
    %v1101 = vmul.f32 %v1100, %v1100
    %v1103 = vrot.slane %v1101, 7
    %v1105 = vsub.f32 %v1100, %v1103
    %v1106 = vadd.f32 %v1105, 1e-05
    %v1107 = vrsqrt.pop %v1106
    %v1110 = vunpack.c.l.s4 1966171168
    %v1111 = vunpack.c.0.s8 %v1110
    %v1112 = vlaneseq
    %v1113 = vshrl.u32 %v1112, 7
    %v1114 = vsub.s32 %v1111, %v1113
    %v1115 = vrot.slane %v1107, %v1114
    %v1116 = vcombine.high %v1115, %v1115
    %v1118 = vunpack.c.l.s4 1966171168
    %v1119 = vunpack.c.0.s8 %v1118
    %v1120 = vlaneseq
    %v1121 = vshrl.u32 %v1120, 7
    %v1122 = vsub.s32 %v1119, %v1121
    %v1123 = vrot.slane %v1116, %v1122
    %v1125 = vmul.f32 %v1005, %v1123
    %v1126 = vmul.f32 %v1100, %v1125
    %v1127 = vsub.f32 %v1006, %v1126
    %v1129 = vlaneseq
    %v1130 = vshrl.u32 %v1129, 7
    %v1131 = vsub.s32 0, %v1130
    %v1132 = vrot.slane %v1125, %v1131
    %v1134 = vmul.f32 %v1001, %v1132
    %v1135 = vmul.f32 %v1002, %v1132
    %v1136 = vmul.f32 %v1003, %v1132
    %v1137 = vmul.f32 %v1004, %v1132
    %v1139 = vlaneseq
    %v1140 = vshrl.u32 %v1139, 7
    %v1141 = vsub.s32 0, %v1140
    %v1142 = vrot.slane %v1127, %v1141
    %v1144 = vadd.f32 %v1134, %v1142
    %v1145 = vadd.f32 %v1135, %v1142
    %v1146 = vadd.f32 %v1136, %v1142
    %v1147 = vadd.f32 %v1137, %v1142
    %v1148 = vadd.f32 %v1144, %v138
    %v1149 = vadd.f32 %v1145, %v139
    %v1150 = vadd.f32 %v1146, %v140
    %v1151 = vadd.f32 %v1147, %v141
    %v1152 = vmax.f32 %v1148, 0.0
    %v1153 = vmax.f32 %v1149, 0.0
    %v1154 = vmax.f32 %v1150, 0.0
    %v1155 = vmax.f32 %v1151, 0.0
    %1156 = vst [vmem:[#allocation10] sm:$0xff] %v1152
    %1157 = vst [vmem:[#allocation10 + $0x8] sm:$0xff] %v1153
    %1158 = vst [vmem:[#allocation10 + $0x10] sm:$0xff] %v1154
    %1159 = vst [vmem:[#allocation10 + $0x18] sm:$0xff] %v1155
    // Predicated region
    $region50: #{tpu_custom_call.1} parent=1 // pred_check
      _
    $region51: #{tpu_custom_call.1} parent=1 // pred_check_branch
      %1161 = sbr.rel (0) target = $region53
    $region52: #{tpu_custom_call.1} parent=1 // pred_region
      %s1163 = ssub.s32 512, 512
      %1164 = vsyncadd [#allocation4], %s1163
      %s1165 = sshll.u32 [#allocation10], 4
      %s1166 = int_to_ptr.vmem [resolvable:$true] %s1165
      %1171 = dma.vmem_to_hbm [thread:$0]  %s1166, 512, %s8, [#allocation4], 128, 128, 8
    $region53: #{tpu_custom_call.1} parent=1 // pred_fallthru
      _
    // Predicated region
    $region54: #{tpu_custom_call.1} parent=1 // pred_check
      _
    $region55: #{tpu_custom_call.1} parent=1 // pred_check_branch
      %1173 = sbr.rel (0) target = $region57
    $region56: #{tpu_custom_call.1} parent=1 // pred_region
      %1174 = dma.done [#allocation4], 512
    $region57: #{tpu_custom_call.1} parent=1 // pred_fallthru
      _
    %1175 = vsyncpa [#allocation3], 1
    %1176 = vsyncpa [#allocation6], 1
    %1177 = vsyncpa [#allocation9], 1
    %1178 = vsyncpa [#allocation4], 1

</llo_original>
